<compile_context>
chip_gen: v6e
topology: v6e:2x2x1
jax: 0.10.0
libtpu: 0.0.40
codegen_flags: <defaults>
</compile_context>

<pallas_src>
import functools
import math

import jax
import jax.numpy as jnp
from jax import lax
from jax.experimental import pallas as pl
from jax.experimental.pallas import tpu as pltpu

NUM_CLASSES = 10
J_CONST = 0.1
EXP_NEG_J = math.exp(-J_CONST)   # trace-time constant; never touches the EUP
MAX_TILE_B = 32768               # 32768*10*4B = 1.3 MB f32 logits per block


def _round_up(x, m):
    return ((x + m - 1) // m) * m


def _sublane_multiple(dtype):
    # Sublane packing granularity: 8 for 4-byte, 16 for 2-byte, 32 for 1-byte.
    return max(8, 32 // jnp.dtype(dtype).itemsize)


def _lenet_loss_kernel(out_ref, lab_ref, loss_ref, *, batch, needs_mask,
                       scalar_out):
    """One grid step over tile_b batch rows (native (B, C) layout).

    out_ref : (tile_b, C)  logits, native dtype, batch on sublanes
    lab_ref : (tile_b, 1)  i32 labels
    loss_ref: (tile_b, 1)  f32 per-row loss terms   (multi-tile path), or
              (1, 1)       f32 final mean loss      (single-tile path)
    """
    step = pl.program_id(0)

    out = out_ref[...].astype(jnp.float32)          # VPU cast: free filler
    lab = lab_ref[...]                              # (tile_b, 1) i32
    tb, c = out.shape

    # Class index on lanes; broadcast-compare against the per-row label.
    cls = lax.broadcasted_iota(jnp.int32, (tb, c), dimension=1)
    is_label = cls == lab                           # (tile_b, C)

    # yDp = output[b, labels[b]]  via masked lane reduction (idle XLU slot).
    yDp = jnp.sum(jnp.where(is_label, out, 0.0), axis=1, keepdims=True)

    # Sum over incorrect classes of exp(-output).
    s = jnp.sum(jnp.where(is_label, 0.0, jnp.exp(-out)), axis=1, keepdims=True)

    # Faithful to the PyTorch module: no log-sum-exp stabilization.
    vals = yDp + jnp.log(EXP_NEG_J + s)             # (tile_b, 1)

    def masked(v):
        row = step * tb + lax.broadcasted_iota(jnp.int32, (tb, 1), dimension=0)
        return jnp.where(row < batch, v, 0.0)

    if scalar_out:
        # Single tile: fold the cross-row reduction and the 1/B scale into the
        # kernel epilogue -> no trailing XLA reduce launch.
        v = masked(vals) if needs_mask else vals
        loss_ref[...] = jnp.sum(v, axis=0, keepdims=True) * (1.0 / batch)
    elif needs_mask:
        # Only the last tile can contain padded rows; full tiles skip masking.
        is_last = step == pl.num_programs(0) - 1

        @pl.when(is_last)
        def _():
            loss_ref[...] = masked(vals)

        @pl.when(jnp.logical_not(is_last))
        def _():
            loss_ref[...] = vals
    else:
        loss_ref[...] = vals


def lenet_loss(output, labels, *, tile_b=None):
    """output: [B, C] float (any float dtype), labels: [B] int -> scalar f32."""
    B, C = output.shape
    sub = _sublane_multiple(output.dtype)

    if tile_b is None:
        n_tiles = pl.cdiv(B, MAX_TILE_B)
        tile_b = _round_up(pl.cdiv(B, n_tiles), sub)
    else:
        tile_b = _round_up(tile_b, sub)
    b_pad = _round_up(B, tile_b)
    n_tiles = b_pad // tile_b
    needs_mask = b_pad != B
    scalar_out = n_tiles == 1

    # No transpose, no dtype upcast: feed the logits exactly as produced.
    logits = output
    lab2 = labels.astype(jnp.int32).reshape(B, 1)
    if needs_mask:
        # Tiny pads; allow_input_fusion lets XLA fold them into the input DMA.
        logits = jnp.pad(logits, ((0, b_pad - B), (0, 0)))
        lab2 = jnp.pad(lab2, ((0, b_pad - B), (0, 0)), constant_values=-1)

    if scalar_out:
        out_shape = jax.ShapeDtypeStruct((1, 1), jnp.float32)
        out_specs = pl.BlockSpec((1, 1), lambda i: (0, 0))
        out_bytes = 4
    else:
        out_shape = jax.ShapeDtypeStruct((b_pad, 1), jnp.float32)
        out_specs = pl.BlockSpec((tile_b, 1), lambda i: (i, 0))
        out_bytes = 4 * b_pad

    itemsize = jnp.dtype(output.dtype).itemsize
    result = pl.pallas_call(
        functools.partial(
            _lenet_loss_kernel,
            batch=B, needs_mask=needs_mask, scalar_out=scalar_out),
        out_shape=out_shape,
        grid=(n_tiles,),
        in_specs=[
            pl.BlockSpec((tile_b, C), lambda i: (i, 0)),
            pl.BlockSpec((tile_b, 1), lambda i: (i, 0)),
        ],
        out_specs=out_specs,
        compiler_params=pltpu.CompilerParams(
            # Per-tile outputs are independent -> shard across TCs on v7x.
            dimension_semantics=("parallel",),
            # Let XLA fuse the pad / reshape producers into the input DMA.
            allow_input_fusion=[True, True],
        ),
        cost_estimate=pl.CostEstimate(
            flops=6 * b_pad * C,
            transcendentals=b_pad * (C + 1),
            bytes_accessed=b_pad * C * itemsize + 4 * b_pad + out_bytes,
        ),
    )(logits, lab2)

    if scalar_out:
        return result[0, 0]
    # Multi-tile: padded rows were zeroed in-kernel, so a plain sum suffices.
    return jnp.sum(result) / B


def lenet_loss_ref(output, labels):
    """Pure-JAX reference mirroring the PyTorch module."""
    output = output.astype(jnp.float32)
    B = output.shape[0]
    yDp = output[jnp.arange(B), labels]
    e_incorrect = jnp.exp(-output)
    e_mask = (jnp.arange(NUM_CLASSES)[None, :] != labels[:, None]).astype(output.dtype)
    e_incorrect = e_incorrect * e_mask
    reg = jnp.log(jnp.float32(math.exp(-J_CONST)) + e_incorrect.sum(axis=1))
    return jnp.mean(yDp + reg)


if __name__ == "__main__":
    key = jax.random.PRNGKey(0)
    k1, k2, k3, k4 = jax.random.split(key, 4)

    # Small single-tile case (scalar-output fast path).
    B1 = 8
    out1 = jax.random.normal(k1, (B1, NUM_CLASSES), dtype=jnp.float32)
    lab1 = jax.random.randint(k2, (B1,), 0, NUM_CLASSES, dtype=jnp.int32)
    loss1 = jax.block_until_ready(lenet_loss(out1, lab1))
    ref1 = jax.block_until_ready(lenet_loss_ref(out1, lab1))
    assert jnp.allclose(loss1, ref1, atol=1e-5, rtol=1e-5), (loss1, ref1)

    # Native-bf16 logits over the wire; kernel upcasts in VMEM (masked tail too).
    out1b = out1.astype(jnp.bfloat16)
    loss1b = jax.block_until_ready(lenet_loss(out1b, lab1))
    ref1b = jax.block_until_ready(lenet_loss_ref(out1b.astype(jnp.float32), lab1))
    assert jnp.allclose(loss1b, ref1b, atol=1e-4, rtol=1e-4), (loss1b, ref1b)

    # Multi-tile case with ragged tail (parallel per-tile outputs + masking).
    B2 = 300
    out2 = jax.random.normal(k3, (B2, NUM_CLASSES), dtype=jnp.float32)
    lab2 = jax.random.randint(k4, (B2,), 0, NUM_CLASSES, dtype=jnp.int32)
    loss2 = jax.block_until_ready(lenet_loss(out2, lab2, tile_b=128))
    ref2 = jax.block_until_ready(lenet_loss_ref(out2, lab2))
    assert jnp.allclose(loss2, ref2, atol=1e-5, rtol=1e-5), (loss2, ref2)

    print("KERNEL_OK")
</pallas_src>

<mosaic_0001>
module attributes {stable_mosaic.version = 11 : i64} {
  func.func @_lenet_loss_kernel(%arg0: i32, %arg1: memref<8x10xf32, #tpu.memory_space<vmem>>, %arg2: memref<8x1xi32, #tpu.memory_space<vmem>>, %arg3: memref<1x1xf32, #tpu.memory_space<vmem>>) attributes {dimension_semantics = [#tpu.dimension_semantics<parallel>], iteration_bounds = array<i64: 1>, scalar_prefetch = 0 : i64, scratch_operands = 0 : i64, tpu.core_type = #tpu.core_type<tc>, window_params = [{transform_indices = @transform_0, window_bounds = array<i64: 8, 10>}, {transform_indices = @transform_1, window_bounds = array<i64: 8, 1>}, {pipeline_mode = #tpu.pipeline_mode<synchronous>, transform_indices = @transform_2, window_bounds = array<i64: 1, 1>}]} {
    %c0 = arith.constant 0 : index
    %c0_0 = arith.constant 0 : index
    %0 = vector.load %arg1[%c0, %c0_0] : memref<8x10xf32, #tpu.memory_space<vmem>>, vector<8x10xf32>
    %c0_1 = arith.constant 0 : index
    %c0_2 = arith.constant 0 : index
    %1 = vector.load %arg2[%c0_1, %c0_2] : memref<8x1xi32, #tpu.memory_space<vmem>>, vector<8x1xi32>
    %2 = tpu.iota {dimensions = array<i32: 1>} : vector<8x10xi32>
    %3 = vector.broadcast %1 : vector<8x1xi32> to vector<8x10xi32>
    %4 = arith.cmpi eq, %2, %3 : vector<8x10xi32>
    %cst = arith.constant 0.000000e+00 : f32
    %5 = vector.broadcast %cst : f32 to vector<8x10xf32>
    %6 = arith.select %4, %0, %5 : vector<8x10xi1>, vector<8x10xf32>
    %cst_3 = arith.constant dense<0.000000e+00> : vector<8xf32>
    %7 = vector.multi_reduction <add>, %6, %cst_3 [1] : vector<8x10xf32> to vector<8xf32>
    %8 = vector.shape_cast %7 : vector<8xf32> to vector<8x1xf32>
    %cst_4 = arith.constant 0.000000e+00 : f32
    %9 = vector.broadcast %cst_4 : f32 to vector<8x10xf32>
    %10 = arith.subf %9, %0 : vector<8x10xf32>
    %11 = math.exp %10 : vector<8x10xf32>
    %cst_5 = arith.constant 0.000000e+00 : f32
    %12 = vector.broadcast %cst_5 : f32 to vector<8x10xf32>
    %13 = arith.select %4, %12, %11 : vector<8x10xi1>, vector<8x10xf32>
    %cst_6 = arith.constant dense<0.000000e+00> : vector<8xf32>
    %14 = vector.multi_reduction <add>, %13, %cst_6 [1] : vector<8x10xf32> to vector<8xf32>
    %15 = vector.shape_cast %14 : vector<8xf32> to vector<8x1xf32>
    %cst_7 = arith.constant 0.904837429 : f32
    %16 = vector.broadcast %cst_7 : f32 to vector<8x1xf32>
    %17 = arith.addf %16, %15 : vector<8x1xf32>
    %18 = math.log %17 : vector<8x1xf32>
    %19 = arith.addf %8, %18 : vector<8x1xf32>
    %cst_8 = arith.constant dense<0.000000e+00> : vector<1xf32>
    %20 = vector.multi_reduction <add>, %19, %cst_8 [0] : vector<8x1xf32> to vector<1xf32>
    %21 = vector.shape_cast %20 : vector<1xf32> to vector<1x1xf32>
    %cst_9 = arith.constant 1.250000e-01 : f32
    %22 = vector.broadcast %cst_9 : f32 to vector<1x1xf32>
    %23 = arith.mulf %21, %22 : vector<1x1xf32>
    %c0_10 = arith.constant 0 : index
    %c0_11 = arith.constant 0 : index
    %24 = vector.load %arg3[%c0_10, %c0_11] : memref<1x1xf32, #tpu.memory_space<vmem>>, vector<1x1xf32>
    tpu.vector_store %arg3[%c0_10, %c0_11], %23 {strides = array<i32>} : memref<1x1xf32, #tpu.memory_space<vmem>>, vector<1x1xf32>,
    return
  }
  func.func @transform_0(%arg0: i32) -> (i32, i32) {
    %c0_i32 = arith.constant 0 : i32
    %c0_i32_0 = arith.constant 0 : i32
    return %arg0, %c0_i32 : i32, i32
  }
  func.func @transform_1(%arg0: i32) -> (i32, i32) {
    %c0_i32 = arith.constant 0 : i32
    %c0_i32_0 = arith.constant 0 : i32
    return %arg0, %c0_i32 : i32, i32
  }
  func.func @transform_2(%arg0: i32) -> (i32, i32) {
    %c0_i32 = arith.constant 0 : i32
    %c0_i32_0 = arith.constant 0 : i32
    %c0_i32_1 = arith.constant 0 : i32
    return %c0_i32, %c0_i32_0 : i32, i32
  }
}

</mosaic_0001>

<llo_original>
// kernel: tpu_custom_call.1
$region0: #{tpu_custom_call.1}
  #allocation0 [shape = 'u32[]', space=smem, size = 0x4, offset = 0x4, fixed_abs, tag = 'smem constant byte address 0x4 - core index']
  #allocation1 [shape = 'u32[144,128]{1,0:T(1,128)}', space=vmem, size = 0x12000, scoped, tag = 'internal scratch']
  %s0 = inlined_call_operand.vmem [shape: f32[8,10], index: 0, kind: input, shape index: {}]
  %s1 = inlined_call_operand.vmem [shape: s32[8,1], index: 1, kind: input, shape index: {}]
  %s2 = inlined_call_operand.hbm [shape: f32[1,1], index: 2, kind: output, shape index: {}]
  %s3 = sld [smem:[#allocation0]]
  $region18: #{tpu_custom_call.1} parent=0
    _
  %s5 = ssub.s32 1, %s3
  %s6 = scalar_select 0, %s5, %s3
  $region1: #{tpu_custom_call.1} parent=0
    #allocation2 [shape = 'u8[512]{0}', space=vmem, size = 0x400, scoped, tag = 'output window, operand 0, single buffered']
    #allocation3 [shape = 's32[1]{0}', space=sflag, size = 0x4, scoped, tag = 'scoped memory for tpu_custom_call.1']
    %7 = vsyncpa [#allocation3], 0
    // Predicated region
    $region2: #{tpu_custom_call.1} parent=1 // pred_check
      _
    $region3: #{tpu_custom_call.1} parent=1 // pred_check_branch
      %9 = sbr.rel (0) target = $region5
    $region4: #{tpu_custom_call.1} parent=1 // pred_region
      _
    $region5: #{tpu_custom_call.1} parent=1 // pred_fallthru
      _
    // Predicated region
    $region6: #{tpu_custom_call.1} parent=1 // pred_check
      _
    $region7: #{tpu_custom_call.1} parent=1 // pred_check_branch
      %11 = sbr.rel (0) target = $region9
    $region8: #{tpu_custom_call.1} parent=1 // pred_region
      _
    $region9: #{tpu_custom_call.1} parent=1 // pred_fallthru
      _
    %v12 = vld [vmem:[%s0] sm:$0xff]
    %v13 = vld [vmem:[%s1] sm:$0xff]
    %v14 = vlaneseq
    %v15 = vand.u32 %v14, 127
    %16 = vset.pattern.permute.xlu0 0
    %17 = vperm.xlu0 %16, %v13
    %v18 = vpop.permute.xlu0 %17
    %vm19 = vcmp.eq.s32.totalorder %v15, %v18
    %v20 = vsel %vm19, %v12, 0.0
    %vm21 = vcmask 80896
    %v22 = vsel %vm21, %v20, 0.0
    %23 = vadd.xlane.f32.xlu0 %v22
    %v24 = vpop.xlane.xlu0 %23
    %v25 = vsub.f32 0.0, %v12
    %v26 = vmul.f32 %v25, 1.442695
    %v27 = vpow.pop %v26
    %v28 = vsel %vm19, 0.0, %v27
    %v29 = vsel %vm21, %v28, 0.0
    %30 = vadd.xlane.f32.xlu0 %v29
    %v31 = vpop.xlane.xlu0 %30
    %v32 = vadd.f32 %v31, 0.9048374
    %v33 = vlog2.pop %v32
    %v34 = vmul.f32 %v33, 0.6931472
    %v35 = vadd.f32 %v24, %v34
    %v36 = vrot.slane %v35, 4
    %v37 = vadd.f32 %v35, %v36
    %v38 = vrot.slane %v37, 2
    %v39 = vadd.f32 %v37, %v38
    %v40 = vrot.slane %v39, 1
    %v41 = vadd.f32 %v39, %v40
    %v42 = vmul.f32 %v41, 0.125
    %vm43 = vcmask 0
    %44 = vst.msk [vmem:[#allocation2] sm:$0x1] %vm43, %v42
    // Predicated region
    $region10: #{tpu_custom_call.1} parent=1 // pred_check
      _
    $region11: #{tpu_custom_call.1} parent=1 // pred_check_branch
      %46 = sbr.rel (0) target = $region13
    $region12: #{tpu_custom_call.1} parent=1 // pred_region
      %s48 = ssub.s32 16, 16
      %49 = vsyncadd [#allocation3], %s48
      %s51 = sshll.u32 [#allocation2], 4
      %s52 = int_to_ptr.vmem [resolvable:$true] %s51
      %54 = dma.vmem_to_hbm [thread:$0]  %s52, 16, %s2, [#allocation3]
    $region13: #{tpu_custom_call.1} parent=1 // pred_fallthru
      _
    // Predicated region
    $region14: #{tpu_custom_call.1} parent=1 // pred_check
      _
    $region15: #{tpu_custom_call.1} parent=1 // pred_check_branch
      %56 = sbr.rel (0) target = $region17
    $region16: #{tpu_custom_call.1} parent=1 // pred_region
      %57 = dma.done [#allocation3], 16
    $region17: #{tpu_custom_call.1} parent=1 // pred_fallthru
      _
    %58 = vsyncpa [#allocation3], 1

</llo_original>
